<compile_context>
chip_gen: v6e
topology: v6e:2x2x1
jax: 0.10.0
libtpu: 0.0.40
codegen_flags: <defaults>
</compile_context>

<pallas_src>
import jax
import jax.numpy as jnp
from jax.experimental import pallas as pl
from jax.experimental.pallas import tpu as pltpu
import numpy as np


def specaugment_kernel(f0_ref, flen_ref, t0_ref, tlen_ref, x_ref, o_ref):
    """Zero rows [f0, f0+fl) and cols [t0, t0+tl) of a channel-0 (H, Wt) tile."""
    b = pl.program_id(0)             # batch index
    wt = pl.program_id(1)            # time-tile index
    H, Wt = x_ref.shape              # (freq, time-tile)

    f0 = f0_ref[b]
    fl = flen_ref[b]
    t0 = t0_ref[b]
    tl = tlen_ref[b]

    # 1-D masks: O(H + Wt) compares, broadcast happens inside the where.
    row = jax.lax.broadcasted_iota(jnp.int32, (H, 1), 0)             # freq idx
    col = jax.lax.broadcasted_iota(jnp.int32, (1, Wt), 1) + wt * Wt  # global time idx

    freq_mask = (row >= f0) & (row < f0 + fl)    # (H, 1)
    time_mask = (col >= t0) & (col < t0 + tl)    # (1, Wt)

    x = x_ref[...]
    o_ref[...] = jnp.where(freq_mask | time_mask, jnp.zeros_like(x), x)


def _pick_time_tile(W):
    """Lane-dense W tile (multiple of 128) when possible, else full extent."""
    for cand in (1024, 512, 256, 128):
        if W % cand == 0:
            return cand
    return W


def spec_augment_pallas(x, f0, flen, t0, tlen):
    """x: (B, C, H, W); f0/flen/t0/tlen: (B,) int32 scalar-prefetch params."""
    B, C, H, W = x.shape
    Wt = _pick_time_tile(W)
    grid = (B, W // Wt)
    # Channel block index pinned to 0: only channel 0 is ever streamed.
    block = pl.BlockSpec(
        (pl.Squeezed(), pl.Squeezed(), H, Wt),
        lambda b, w, f0r, flr, t0r, tlr: (b, 0, 0, w),
    )
    return pl.pallas_call(
        specaugment_kernel,
        out_shape=jax.ShapeDtypeStruct(x.shape, x.dtype),
        grid_spec=pltpu.PrefetchScalarGridSpec(
            num_scalar_prefetch=4,
            grid=grid,
            in_specs=[block],
            out_specs=block,
        ),
        # x is input index 4 (after the 4 scalar-prefetch args); aliasing it to
        # output 0 means channels 1..C-1 are never copied by the kernel.
        input_output_aliases={4: 0},
        compiler_params=pltpu.CompilerParams(
            dimension_semantics=("parallel", "parallel")),
    )(f0, flen, t0, tlen, x)


def spec_augment(x, key, *, time_mask=30, freq_mask=13, training=True):
    """Vectorised (jittable) random-mask-parameter draw mirroring torch.randint
    semantics, then the Pallas kernel.  Eval mode: identity."""
    if not training:
        return x, None
    B, C, H, W = x.shape
    k1, k2, k3, k4 = jax.random.split(key, 4)
    tl = jax.random.randint(k1, (B,), 0, time_mask, dtype=jnp.int32)
    fl = jax.random.randint(k2, (B,), 0, freq_mask, dtype=jnp.int32)
    t0 = jax.random.randint(k3, (B,), 0, jnp.maximum(1, W - tl), dtype=jnp.int32)
    f0 = jax.random.randint(k4, (B,), 0, jnp.maximum(1, H - fl), dtype=jnp.int32)
    return spec_augment_pallas(x, f0, fl, t0, tl), (f0, fl, t0, tl)


def _reference(x_np, f0s, fls, t0s, tls):
    """Pure-numpy reference mirroring the PyTorch forward."""
    x = np.array(x_np, copy=True)
    for i in range(x.shape[0]):
        f0, f, t0, t = int(f0s[i]), int(fls[i]), int(t0s[i]), int(tls[i])
        x[i, 0, f0:f0 + f, :] = 0
        x[i, 0, :, t0:t0 + t] = 0
    return x


def _run_case(x, kmask):
    x_np = np.array(x)  # snapshot before the call (output aliases the input)
    out, (f0s, fls, t0s, tls) = spec_augment(
        x, kmask, time_mask=30, freq_mask=13, training=True)
    out = jax.block_until_ready(out)
    ref = _reference(x_np, np.array(f0s), np.array(fls),
                     np.array(t0s), np.array(tls))
    np.testing.assert_allclose(np.array(out), ref, rtol=0, atol=0)


if __name__ == "__main__":
    key = jax.random.PRNGKey(0)
    kx1, km1, kx2, km2 = jax.random.split(key, 4)

    # Case 1: small NCHW spectrogram batch (full-extent W block).
    x1 = jax.random.normal(kx1, (2, 4, 16, 16), dtype=jnp.float32)
    _run_case(x1, km1)

    # Case 2: lane-dense path — W=384 tiles into 3 x 128-wide blocks,
    # exercising the global time-offset math across W tiles.
    x2 = jax.random.normal(kx2, (2, 3, 16, 384), dtype=jnp.float32)
    _run_case(x2, km2)

    # Eval-mode path is the identity (no kernel launch).
    assert spec_augment(x1, km1, training=False)[0] is x1

    print("KERNEL_OK")
</pallas_src>

<mosaic_0001>
module attributes {stable_mosaic.version = 11 : i64} {
  func.func @specaugment_kernel(%arg0: i32, %arg1: i32, %arg2: memref<2xi32, #tpu.memory_space<smem>>, %arg3: memref<2xi32, #tpu.memory_space<smem>>, %arg4: memref<2xi32, #tpu.memory_space<smem>>, %arg5: memref<2xi32, #tpu.memory_space<smem>>, %arg6: memref<1x1x16x16xf32, #tpu.memory_space<vmem>>, %arg7: memref<1x1x16x16xf32, #tpu.memory_space<vmem>>) attributes {dimension_semantics = [#tpu.dimension_semantics<parallel>, #tpu.dimension_semantics<parallel>], iteration_bounds = array<i64: 2, 1>, scalar_prefetch = 4 : i64, scratch_operands = 0 : i64, tpu.core_type = #tpu.core_type<tc>, window_params = [{transform_indices = @transform_0, window_bounds = array<i64: 1, 1, 16, 16>}, {transform_indices = @transform_1, window_bounds = array<i64: 1, 1, 16, 16>}]} {
    %0 = arith.index_cast %arg0 : i32 to index
    %1 = memref.load %arg2[%0] : memref<2xi32, #tpu.memory_space<smem>>
    %2 = arith.index_cast %arg0 : i32 to index
    %3 = memref.load %arg3[%2] : memref<2xi32, #tpu.memory_space<smem>>
    %4 = arith.index_cast %arg0 : i32 to index
    %5 = memref.load %arg4[%4] : memref<2xi32, #tpu.memory_space<smem>>
    %6 = arith.index_cast %arg0 : i32 to index
    %7 = memref.load %arg5[%6] : memref<2xi32, #tpu.memory_space<smem>>
    %8 = tpu.iota {dimensions = array<i32: 0>} : vector<16x1xi32>
    %9 = tpu.iota {dimensions = array<i32: 1>} : vector<1x16xi32>
    %c16_i32 = arith.constant 16 : i32
    %10 = arith.muli %arg1, %c16_i32 : i32
    %11 = vector.broadcast %10 : i32 to vector<1x16xi32>
    %12 = arith.addi %9, %11 : vector<1x16xi32>
    %13 = vector.broadcast %1 : i32 to vector<16x1xi32>
    %14 = arith.cmpi sge, %8, %13 : vector<16x1xi32>
    %15 = arith.addi %1, %3 : i32
    %16 = vector.broadcast %15 : i32 to vector<16x1xi32>
    %17 = arith.cmpi slt, %8, %16 : vector<16x1xi32>
    %18 = arith.andi %14, %17 : vector<16x1xi1>
    %19 = vector.broadcast %5 : i32 to vector<1x16xi32>
    %20 = arith.cmpi sge, %12, %19 : vector<1x16xi32>
    %21 = arith.addi %5, %7 : i32
    %22 = vector.broadcast %21 : i32 to vector<1x16xi32>
    %23 = arith.cmpi slt, %12, %22 : vector<1x16xi32>
    %24 = arith.andi %20, %23 : vector<1x16xi1>
    %c0 = arith.constant 0 : index
    %c0_0 = arith.constant 0 : index
    %c0_1 = arith.constant 0 : index
    %c0_2 = arith.constant 0 : index
    %25 = vector.load %arg6[%c0, %c0_0, %c0_1, %c0_2] : memref<1x1x16x16xf32, #tpu.memory_space<vmem>>, vector<1x1x16x16xf32>
    %26 = vector.shape_cast %25 : vector<1x1x16x16xf32> to vector<16x16xf32>
    %27 = vector.broadcast %18 : vector<16x1xi1> to vector<16x16xi1>
    %28 = vector.broadcast %24 : vector<1x16xi1> to vector<16x16xi1>
    %29 = arith.ori %27, %28 : vector<16x16xi1>
    %cst = arith.constant 0.000000e+00 : f32
    %30 = vector.broadcast %cst : f32 to vector<16x16xf32>
    %31 = arith.select %29, %30, %26 : vector<16x16xi1>, vector<16x16xf32>
    %c0_3 = arith.constant 0 : index
    %c0_4 = arith.constant 0 : index
    %c0_5 = arith.constant 0 : index
    %c0_6 = arith.constant 0 : index
    %32 = vector.load %arg7[%c0_3, %c0_4, %c0_5, %c0_6] : memref<1x1x16x16xf32, #tpu.memory_space<vmem>>, vector<1x1x16x16xf32>
    %33 = vector.shape_cast %32 : vector<1x1x16x16xf32> to vector<16x16xf32>
    %34 = vector.shape_cast %31 : vector<16x16xf32> to vector<1x1x16x16xf32>
    tpu.vector_store %arg7[%c0_3, %c0_4, %c0_5, %c0_6], %34 {strides = array<i32>} : memref<1x1x16x16xf32, #tpu.memory_space<vmem>>, vector<1x1x16x16xf32>,
    return
  }
  func.func @transform_0(%arg0: i32, %arg1: i32, %arg2: memref<2xi32, #tpu.memory_space<smem>>, %arg3: memref<2xi32, #tpu.memory_space<smem>>, %arg4: memref<2xi32, #tpu.memory_space<smem>>, %arg5: memref<2xi32, #tpu.memory_space<smem>>) -> (i32, i32, i32, i32) {
    %c0_i32 = arith.constant 0 : i32
    %c0_i32_0 = arith.constant 0 : i32
    %c0_i32_1 = arith.constant 0 : i32
    return %arg0, %c0_i32, %c0_i32_0, %arg1 : i32, i32, i32, i32
  }
  func.func @transform_1(%arg0: i32, %arg1: i32, %arg2: memref<2xi32, #tpu.memory_space<smem>>, %arg3: memref<2xi32, #tpu.memory_space<smem>>, %arg4: memref<2xi32, #tpu.memory_space<smem>>, %arg5: memref<2xi32, #tpu.memory_space<smem>>) -> (i32, i32, i32, i32) {
    %c0_i32 = arith.constant 0 : i32
    %c0_i32_0 = arith.constant 0 : i32
    %c0_i32_1 = arith.constant 0 : i32
    return %arg0, %c0_i32, %c0_i32_0, %arg1 : i32, i32, i32, i32
  }
}

</mosaic_0001>

<llo_original>
// kernel: tpu_custom_call.1
$region0: #{tpu_custom_call.1}
  #allocation0 [shape = 'u32[]', space=smem, size = 0x4, offset = 0x4, fixed_abs, tag = 'smem constant byte address 0x4 - core index']
  #allocation1 [shape = 'u32[144,128]{1,0:T(1,128)}', space=vmem, size = 0x12000, scoped, tag = 'internal scratch']
  #allocation2 [shape = 's32[1]{0}', space=sflag, size = 0x4, scoped, tag = 'scoped memory for tpu_custom_call.1']
  #allocation3 [shape = 'u8[512]{0}', space=smem, size = 0x200, scoped, tag = 'prefetched SMEM operand 0']
  #allocation4 [shape = 'u8[512]{0}', space=smem, size = 0x200, scoped, tag = 'prefetched SMEM operand 1']
  #allocation5 [shape = 'u8[512]{0}', space=smem, size = 0x200, scoped, tag = 'prefetched SMEM operand 2']
  #allocation6 [shape = 'u8[512]{0}', space=smem, size = 0x200, scoped, tag = 'prefetched SMEM operand 3']
  %s0 = inlined_call_operand.vmem [shape: s32[2], index: 0, kind: input, shape index: {}]
  %s1 = inlined_call_operand.vmem [shape: s32[2], index: 1, kind: input, shape index: {}]
  %s2 = inlined_call_operand.vmem [shape: s32[2], index: 2, kind: input, shape index: {}]
  %s3 = inlined_call_operand.vmem [shape: s32[2], index: 3, kind: input, shape index: {}]
  %s4 = inlined_call_operand.hbm [shape: f32[2,4,16,16], index: 4, kind: input, shape index: {}, may-alias: {4,5}]
  %s5 = inlined_call_operand.hbm [shape: f32[2,4,16,16], index: 5, kind: output, shape index: {}, may-alias: {4,5}]
  %s6 = sld [smem:[#allocation0]]
  $region41: #{tpu_custom_call.1} parent=0
    _
  %s8 = ssub.s32 1, %s6
  %s9 = scalar_select 0, %s8, %s6
  %s10 = sshll.u32 %s0, 4
  %s11 = int_to_ptr.vmem [resolvable:$true] %s10
  %13 = dma.vmem_to_smem %s11, 16, [#allocation3], [#allocation2]
  %s14 = sshll.u32 %s1, 4
  %s15 = int_to_ptr.vmem [resolvable:$true] %s14
  %17 = dma.vmem_to_smem %s15, 16, [#allocation4], [#allocation2]
  %s18 = sshll.u32 %s2, 4
  %s19 = int_to_ptr.vmem [resolvable:$true] %s18
  %21 = dma.vmem_to_smem %s19, 16, [#allocation5], [#allocation2]
  %s22 = sshll.u32 %s3, 4
  %s23 = int_to_ptr.vmem [resolvable:$true] %s22
  %25 = dma.vmem_to_smem %s23, 16, [#allocation6], [#allocation2]
  %26 = dma.done [#allocation2], 64
  %27 = sfence
  $region1: #{tpu_custom_call.1} parent=0
    #allocation7 [shape = 'u8[16384]{0}', space=vmem, size = 0x4000, scoped, tag = 'input window, operand 4']
    #allocation8 [shape = 's32[2]{0}', space=sflag, size = 0x8, scoped, tag = 'scoped memory for tpu_custom_call.1']
    #allocation9 [shape = 's32[2]{0}', space=sflag, size = 0x8, scoped, tag = 'scoped memory for tpu_custom_call.1']
    #allocation10 [shape = 'u8[16384]{0}', space=vmem, size = 0x4000, scoped, tag = 'output window, operand 0']
    %28 = vsyncpa [#allocation8], 0
    %s29 = scalar_lea.sflag [#allocation8], 1
    %30 = vsyncpa %s29, 0
    %31 = vsyncpa [#allocation9], 0
    %s32 = scalar_lea.sflag [#allocation9], 1
    %33 = vsyncpa %s32, 0
    loop: start=0, step=1, limit=4
    $region2: #{tpu_custom_call.1} parent=1 // loop_pre_header
      _
    $region3: #{tpu_custom_call.1} parent=1 // loop_header
      %s35 = sphi 0, %s39
      %p36 = scmp.ge.s32.totalorder %s35, 4
      %s42 = sphi 0, %s54
      %s43 = sphi 0, %s50
      %s44 = sphi 0, %s42
      %s45 = sphi 0, %s43
      %s46 = sphi 0, %s44
      %s47 = sphi 0, %s45
      %s59 = sphi 0, %s61
      %s62 = sphi 0, %s59
      %s63 = sphi 0, %s62
      %s79 = sphi 0, %s63
      %s87 = sphi 0, %s89
      %s90 = sphi 0, %s87
      %s91 = sphi 0, %s90
      %s107 = sphi 0, %s91
    $region4: #{tpu_custom_call.1} parent=1 // loop_header_branch
      %38 = sbr.rel (%p36) target = $region8
    $region5: #{tpu_custom_call.1} parent=1 // loop_body
      %s40 = ssub.s32 %s35, 1
      %s41 = ssub.s32 %s35, 2
      %s48 = sadd.s32 1, %s43
      %p49 = scmp.ge.s32.totalorder %s48, 1
      %s50 = scalar_select %p49, 0, %s48
      %s51 = sadd.s32 1, %s42
      %s52 = scalar_select %p49, %s51, %s42
      %p53 = scmp.ge.s32.totalorder %s52, 2
      %s54 = scalar_select %p53, 0, %s52
      %s55 = ssub.s32 %s42, %s54
      %s56 = ssub.s32 %s43, %s50
      %s57 = sor.u32 %s55, %s56
      %p58 = scmp.eq.s32.totalorder %s57, 0
      %s60 = sadd.s32 %s59, 1
      %s61 = scalar_select %p58, %s59, %s60
      %p64 = pneg %p58
      %p65 = scmp.eq.s32.totalorder %s35, 1
      %p66 = por %p64, %p65
      %p67 = scmp.ne.s32.totalorder %s59, %s62
      %p68 = scmp.eq.s32.totalorder %s35, 0
      %p69 = por %p67, %p68
      %p70 = scmp.ne.s32.totalorder %s59, %s62
      %p71 = scmp.eq.s32.totalorder %s40, 1
      %p72 = por %p70, %p71
      %p73 = scmp.ne.s32.totalorder %s62, %s63
      %p74 = scmp.eq.s32.totalorder %s40, 0
      %p75 = por %p73, %p74
      %p76 = scmp.ne.s32.totalorder %s62, %s63
      %p77 = scmp.eq.s32.totalorder %s41, 1
      %p78 = por %p76, %p77
      %p80 = scmp.ne.s32.totalorder %s63, %s79
      %p81 = scmp.eq.s32.totalorder %s41, 0
      %p82 = por %p80, %p81
      %s83 = ssub.s32 %s42, %s54
      %s84 = ssub.s32 %s43, %s50
      %s85 = sor.u32 %s83, %s84
      %p86 = scmp.eq.s32.totalorder %s85, 0
      %s88 = sadd.s32 %s87, 1
      %s89 = scalar_select %p86, %s87, %s88
      %p92 = pneg %p86
      %p93 = scmp.eq.s32.totalorder %s35, 1
      %p94 = por %p92, %p93
      %p95 = scmp.ne.s32.totalorder %s87, %s90
      %p96 = scmp.eq.s32.totalorder %s35, 0
      %p97 = por %p95, %p96
      %p98 = scmp.ne.s32.totalorder %s87, %s90
      %p99 = scmp.eq.s32.totalorder %s40, 1
      %p100 = por %p98, %p99
      %p101 = scmp.ne.s32.totalorder %s90, %s91
      %p102 = scmp.eq.s32.totalorder %s40, 0
      %p103 = por %p101, %p102
      %p104 = scmp.ne.s32.totalorder %s90, %s91
      %p105 = scmp.eq.s32.totalorder %s41, 1
      %p106 = por %p104, %p105
      %p108 = scmp.ne.s32.totalorder %s91, %s107
      %p109 = scmp.eq.s32.totalorder %s41, 0
      %p110 = por %p108, %p109
      %p111 = scmp.le.s32.totalorder 1, %s35
      %p112 = scmp.lt.s32.totalorder %s35, 3
      %p113 = pnand %p111, %p112
      %p114 = pneg %p113
      // Predicated region
      $region9: #{tpu_custom_call.1} parent=5 // pred_check
        _
      $region10: #{tpu_custom_call.1} parent=5 // pred_check_branch
        %116 = sbr.rel (%p113) target = $region12
      $region11: #{tpu_custom_call.1} parent=5 // pred_region
        %s117 = ssub.s32 %s35, 1
      $region12: #{tpu_custom_call.1} parent=5 // pred_fallthru
        _
      %p118 = scmp.lt.s32.totalorder %s35, 2
      // Predicated region
      $region13: #{tpu_custom_call.1} parent=5 // pred_check
        %p119 = pneg %p118
      $region14: #{tpu_custom_call.1} parent=5 // pred_check_branch
        %121 = sbr.rel (%p119) target = $region16
      $region15: #{tpu_custom_call.1} parent=5 // pred_region
        // Predicated region
        $region17: #{tpu_custom_call.1} parent=15 // pred_check
          %p122 = pneg %p69
        $region18: #{tpu_custom_call.1} parent=15 // pred_check_branch
          %124 = sbr.rel (%p122) target = $region20
        $region19: #{tpu_custom_call.1} parent=15 // pred_region
          %s125 = sand.u32 %s59, 1
          %s126 = scalar_lea.sflag [#allocation8], %s125
          %s127 = sand.u32 %s59, 1
          %s128 = smul.addr %s127, 16
          %s129 = scalar_lea.vmem [#allocation7], %s128
          %s131 = ssub.s32 256, 256
          %132 = vsyncadd %s126, %s131
          %s133 = smul.addr %s42, 8
          %s134 = sadd.s32 %s43, %s133
          %s135 = smul.addr %s134, 128
          %s136 = scalar_lea.hbm %s4, %s135
          %s137 = sshll.u32 %s129, 4
          %s138 = int_to_ptr.vmem [resolvable:$true] %s137
          %143 = dma.hbm_to_vmem [thread:$0]  %s136, 256, %s138, %s126, 128, 128, 8
        $region20: #{tpu_custom_call.1} parent=15 // pred_fallthru
          _
      $region16: #{tpu_custom_call.1} parent=5 // pred_fallthru
        _
      %p144 = scmp.le.s32.totalorder 1, %s35
      %p145 = scmp.lt.s32.totalorder %s35, 3
      %p146 = pnand %p144, %p145
      %p147 = pneg %p146
      // Predicated region
      $region21: #{tpu_custom_call.1} parent=5 // pred_check
        _
      $region22: #{tpu_custom_call.1} parent=5 // pred_check_branch
        %149 = sbr.rel (%p146) target = $region24
      $region23: #{tpu_custom_call.1} parent=5 // pred_region
        %s150 = ssub.s32 %s35, 1
        %s151 = sand.u32 %s62, 1
        %s152 = scalar_lea.sflag [#allocation8], %s151
        %s153 = sand.u32 %s62, 1
        %s154 = smul.addr %s153, 16
        %s155 = scalar_lea.vmem [#allocation7], %s154
        // Predicated region
        $region25: #{tpu_custom_call.1} parent=23 // pred_check
          %p156 = pneg %p75
        $region26: #{tpu_custom_call.1} parent=23 // pred_check_branch
          %158 = sbr.rel (%p156) target = $region28
        $region27: #{tpu_custom_call.1} parent=23 // pred_region
          %159 = dma.done %s152, 256
        $region28: #{tpu_custom_call.1} parent=23 // pred_fallthru
          _
        %s160 = sand.u32 %s62, 1
        %s161 = scalar_lea.sflag [#allocation8], %s160
        %s162 = sand.u32 %s62, 1
        %s163 = smul.addr %s162, 16
        %s164 = scalar_lea.vmem [#allocation7], %s163
        %p165 = pneg %p75
        %p166 = pneg %p72
        %p167 = pneg %p103
        %p168 = pneg %p100
        %s169 = sand.u32 %s90, 1
        %s170 = scalar_lea.sflag [#allocation9], %s169
        %s171 = sand.u32 %s90, 1
        %s172 = smul.addr %s171, 16
        %s173 = scalar_lea.vmem [#allocation10], %s172
        %s174 = sld [smem:[#allocation3 + %s44]]
        %s175 = sld [smem:[#allocation4 + %s44]]
        %s176 = sld [smem:[#allocation5 + %s44]]
        %s177 = sld [smem:[#allocation6 + %s44]]
        %v178 = vlaneseq
        %v179 = vshrl.u32 %v178, 7
        %v180 = vadd.s32 %v179, 8
        %v181 = vlaneseq
        %v182 = vand.u32 %v181, 127
        %s183 = smul.u32 %s45, 16
        %v184 = vstv %s183
        %v185 = vadd.s32 %v182, %v184
        %v186 = vstv %s174
        %vm187 = vcmp.ge.s32.totalorder %v179, %v186
        %vm188 = vcmp.ge.s32.totalorder %v180, %v186
        %s189 = sadd.s32 %s174, %s175
        %v190 = vstv %s189
        %vm191 = vcmp.lt.s32.totalorder %v179, %v190
        %vm192 = vcmp.lt.s32.totalorder %v180, %v190
        %vm193 = vmand %vm187, %vm191
        %vm194 = vmand %vm188, %vm192
        %v195 = vstv %s176
        %vm196 = vcmp.ge.s32.totalorder %v185, %v195
        %s197 = sadd.s32 %s176, %s177
        %v198 = vstv %s197
        %vm199 = vcmp.lt.s32.totalorder %v185, %v198
        %vm200 = vmand %vm196, %vm199
        %v201 = vld [vmem:[%s155] sm:$0xff]
        %v202 = vld [vmem:[%s155 + $0x8] sm:$0xff]
        %v203 = vsel %vm193, 1, 0
        %v204 = vsel %vm194, 1, 0
        %vm205 = vcmp.eq.s32.totalorder %v203, 1
        %vm206 = vcmp.eq.s32.totalorder %v204, 1
        %v207 = vsel %vm200, 1, 0
        %vm208 = vcmp.eq.s32.totalorder %v207, 1
        %vm209 = vmor %vm205, %vm208
        %vm210 = vmor %vm206, %vm208
        %v211 = vsel %vm209, 0.0, %v201
        %v212 = vsel %vm210, 0.0, %v202
        %vm213 = vcmask 130048
        %214 = vst.msk [vmem:[%s173] sm:$0xff] %vm213, %v211
        %215 = vst.msk [vmem:[%s173 + $0x8] sm:$0xff] %vm213, %v212
        %s216 = sand.u32 %s90, 1
        %s217 = scalar_lea.sflag [#allocation9], %s216
        %s218 = sand.u32 %s90, 1
        %s219 = smul.addr %s218, 16
        %s220 = scalar_lea.vmem [#allocation10], %s219
        // Predicated region
        $region29: #{tpu_custom_call.1} parent=23 // pred_check
          %p221 = pneg %p100
        $region30: #{tpu_custom_call.1} parent=23 // pred_check_branch
          %223 = sbr.rel (%p221) target = $region32
        $region31: #{tpu_custom_call.1} parent=23 // pred_region
          %s225 = ssub.s32 256, 256
          %226 = vsyncadd %s217, %s225
          %s227 = smul.addr %s44, 8
          %s228 = sadd.s32 %s45, %s227
          %s229 = smul.addr %s228, 128
          %s230 = scalar_lea.hbm %s5, %s229
          %s231 = sshll.u32 %s220, 4
          %s232 = int_to_ptr.vmem [resolvable:$true] %s231
          %237 = dma.vmem_to_hbm [thread:$0]  %s232, 256, %s230, %s217, 128, 128, 8
        $region32: #{tpu_custom_call.1} parent=23 // pred_fallthru
          _
      $region24: #{tpu_custom_call.1} parent=5 // pred_fallthru
        _
      %p238 = scmp.le.s32.totalorder 2, %s35
      // Predicated region
      $region33: #{tpu_custom_call.1} parent=5 // pred_check
        %p239 = pneg %p238
      $region34: #{tpu_custom_call.1} parent=5 // pred_check_branch
        %241 = sbr.rel (%p239) target = $region36
      $region35: #{tpu_custom_call.1} parent=5 // pred_region
        %s242 = ssub.s32 %s35, 2
        // Predicated region
        $region37: #{tpu_custom_call.1} parent=35 // pred_check
          %p243 = pneg %p106
        $region38: #{tpu_custom_call.1} parent=35 // pred_check_branch
          %245 = sbr.rel (%p243) target = $region40
        $region39: #{tpu_custom_call.1} parent=35 // pred_region
          %s246 = sand.u32 %s91, 1
          %s247 = scalar_lea.sflag [#allocation9], %s246
          %s248 = sand.u32 %s91, 1
          %s249 = smul.addr %s248, 16
          %s250 = scalar_lea.vmem [#allocation10], %s249
          %251 = dma.done %s247, 256
        $region40: #{tpu_custom_call.1} parent=35 // pred_fallthru
          _
      $region36: #{tpu_custom_call.1} parent=5 // pred_fallthru
        _
    $region6: #{tpu_custom_call.1} parent=1 // loop_footer
      %s39 = sadd.s32 1, %s35
    $region7: #{tpu_custom_call.1} parent=1 // loop_footer_branch
      %34 = sbr.rel target = $region3
    $region8: #{tpu_custom_call.1} parent=1 // loop_exit
      _
    %252 = vsyncpa [#allocation8], 1
    %s253 = scalar_lea.sflag [#allocation8], 1
    %254 = vsyncpa %s253, 1
    %255 = vsyncpa [#allocation9], 1
    %s256 = scalar_lea.sflag [#allocation9], 1
    %257 = vsyncpa %s256, 1

</llo_original>
